<compile_context>
chip_gen: v5e
topology: v5e:2x2
jax: 0.10.0
libtpu: 0.0.40
codegen_flags: <defaults>
</compile_context>

<pallas_src>
import jax
import jax.numpy as jnp
from jax.experimental import pallas as pl
from jax.experimental.pallas import tpu as pltpu

ALPHA = 0.1
C = 1.0
_PLU_K = C * (1.0 - ALPHA)   # c - alpha*c, folded constant


def _plu(x):
    # f32 inside the kernel (native VPU path on all chips).
    # max(alpha*(x+c)-c, min(alpha*(x-c)+c, x)) == max(t-k, min(t+k, x)),
    # with t = alpha*x, k = c*(1-alpha).
    t = ALPHA * x
    return jnp.maximum(t - _PLU_K, jnp.minimum(t + _PLU_K, x))


def _plu_ref(x):
    # Literal form of the PyTorch PLU, used only by the reference check.
    return jnp.maximum(ALPHA * (x + C) - C, jnp.minimum(ALPHA * (x - C) + C, x))


def _round_up(n, m):
    return (n + m - 1) // m * m


def _target_encoder_kernel(x_ref, w0_ref, b0_ref, w1_ref, b1_ref, o_ref):
    # fc0: [tb, in] @ [in, hidden] -> f32 [tb, hidden]  (bf16 operands, f32 acc)
    h = jnp.dot(x_ref[...], w0_ref[...], preferred_element_type=jnp.float32)
    h = _plu(h + b0_ref[...])                      # bias add + PLU in f32
    # fc1: [tb, hidden] @ [hidden, out] -> f32 [tb, out]
    y = jnp.dot(h.astype(w1_ref.dtype), w1_ref[...],
                preferred_element_type=jnp.float32)
    y = _plu(y + b1_ref[...])
    o_ref[...] = y.astype(o_ref.dtype)


def target_encoder(x, w0, b0, w1, b1, *, tb=256, matmul_dtype=jnp.bfloat16):
    """x: [B, in_dim]; w0: [in_dim, hidden]; b0: [hidden];
    w1: [hidden, out_dim]; b1: [out_dim] -> [B, out_dim] (same dtype as x)."""
    B, in_dim = x.shape
    hidden = w0.shape[1]
    out_dim = w1.shape[1]
    out_dtype = x.dtype

    # Lane-align every feature dim (multiples of 128 => lane-dense loads/stores).
    in_p = _round_up(in_dim, 128)
    hid_p = _round_up(hidden, 128)
    out_p = _round_up(out_dim, 128)

    # Batch tile: multiple of 8 sublanes, large enough to feed the MXU.  If the
    # whole batch fits in one tile, split it so the parallel grid axis has >= 2
    # steps (v7x megacore).  Ragged batches are zero-padded.
    B8 = _round_up(B, 8)
    tb_eff = min(_round_up(tb, 8), B8)
    if B8 <= tb_eff and B8 >= 16:
        tb_eff = _round_up(B8 // 2, 8)
    Bp = _round_up(B8, tb_eff)
    grid = Bp // tb_eff

    # One-time casts + zero padding in the wrapper (not per grid step).
    xp = jnp.pad(x.astype(matmul_dtype), ((0, Bp - B), (0, in_p - in_dim)))
    w0p = jnp.pad(w0.astype(matmul_dtype), ((0, in_p - in_dim), (0, hid_p - hidden)))
    w1p = jnp.pad(w1.astype(matmul_dtype), ((0, hid_p - hidden), (0, out_p - out_dim)))
    # Biases stay f32, shaped [1, out] so they broadcast over the batch tile.
    b0p = jnp.pad(b0.astype(jnp.float32), (0, hid_p - hidden)).reshape(1, hid_p)
    b1p = jnp.pad(b1.astype(jnp.float32), (0, out_p - out_dim)).reshape(1, out_p)

    def _nbytes(a):
        return a.size * a.dtype.itemsize

    cost = pl.CostEstimate(
        flops=2 * Bp * (in_p * hid_p + hid_p * out_p),
        transcendentals=0,
        bytes_accessed=(_nbytes(xp) + _nbytes(w0p) + _nbytes(b0p)
                        + _nbytes(w1p) + _nbytes(b1p)
                        + Bp * out_p * jnp.dtype(out_dtype).itemsize),
    )

    out = pl.pallas_call(
        _target_encoder_kernel,
        out_shape=jax.ShapeDtypeStruct((Bp, out_p), out_dtype),
        grid_spec=pltpu.PrefetchScalarGridSpec(
            num_scalar_prefetch=0,
            grid=(grid,),
            in_specs=[
                pl.BlockSpec((tb_eff, in_p), lambda i: (i, 0)),    # x batch tile
                pl.BlockSpec((in_p, hid_p), lambda i: (0, 0)),     # W0 (resident)
                pl.BlockSpec((1, hid_p), lambda i: (0, 0)),        # b0 (resident)
                pl.BlockSpec((hid_p, out_p), lambda i: (0, 0)),    # W1 (resident)
                pl.BlockSpec((1, out_p), lambda i: (0, 0)),        # b1 (resident)
            ],
            out_specs=pl.BlockSpec((tb_eff, out_p), lambda i: (i, 0)),
        ),
        compiler_params=pltpu.CompilerParams(
            dimension_semantics=("parallel",)),
        cost_estimate=cost,
    )(xp, w0p, b0p, w1p, b1p)

    return out[:B, :out_dim]


def target_encoder_ref(x, w0, b0, w1, b1):
    h = _plu_ref(x @ w0 + b0)
    return _plu_ref(h @ w1 + b1)


if __name__ == "__main__":
    # Small shapes consistent with the module (defaults hidden=512, out=256).
    B, IN_DIM, HIDDEN, OUT_DIM = 16, 96, 512, 256

    key = jax.random.PRNGKey(0)
    kx, kw0, kb0, kw1, kb1 = jax.random.split(key, 5)

    x = jax.random.normal(kx, (B, IN_DIM), dtype=jnp.float32)
    # Deterministic "nn.Linear"-style init (uniform in +-1/sqrt(fan_in)).
    w0 = jax.random.uniform(kw0, (IN_DIM, HIDDEN), jnp.float32,
                            -1.0 / IN_DIM**0.5, 1.0 / IN_DIM**0.5)
    b0 = jax.random.uniform(kb0, (HIDDEN,), jnp.float32,
                            -1.0 / IN_DIM**0.5, 1.0 / IN_DIM**0.5)
    w1 = jax.random.uniform(kw1, (HIDDEN, OUT_DIM), jnp.float32,
                            -1.0 / HIDDEN**0.5, 1.0 / HIDDEN**0.5)
    b1 = jax.random.uniform(kb1, (OUT_DIM,), jnp.float32,
                            -1.0 / HIDDEN**0.5, 1.0 / HIDDEN**0.5)

    ref = target_encoder_ref(x, w0, b0, w1, b1)

    # 1) Structural correctness check: f32 operand path, tight tolerance.
    out_f32 = jax.block_until_ready(
        target_encoder(x, w0, b0, w1, b1, matmul_dtype=jnp.float32))
    assert out_f32.shape == (B, OUT_DIM)
    assert jnp.allclose(out_f32, ref, atol=1e-4, rtol=1e-4), "f32 mismatch vs reference"

    # 2) Default fast path: bf16 matmul operands, f32 accumulation.
    out = jax.block_until_ready(target_encoder(x, w0, b0, w1, b1))
    assert out.shape == (B, OUT_DIM)
    assert jnp.allclose(out, ref, atol=5e-2, rtol=5e-2), "bf16 mismatch vs reference"

    print("KERNEL_OK")
</pallas_src>

<mosaic_0001>
module attributes {stable_mosaic.version = 11 : i64} {
  func.func @_target_encoder_kernel(%arg0: i32, %arg1: memref<8x128xf32, #tpu.memory_space<vmem>>, %arg2: memref<128x512xf32, #tpu.memory_space<vmem>>, %arg3: memref<1x512xf32, #tpu.memory_space<vmem>>, %arg4: memref<512x256xf32, #tpu.memory_space<vmem>>, %arg5: memref<1x256xf32, #tpu.memory_space<vmem>>, %arg6: memref<8x256xf32, #tpu.memory_space<vmem>>) attributes {dimension_semantics = [#tpu.dimension_semantics<parallel>], iteration_bounds = array<i64: 2>, scalar_prefetch = 0 : i64, scratch_operands = 0 : i64, tpu.core_type = #tpu.core_type<tc>, window_params = [{transform_indices = @transform_0, window_bounds = array<i64: 8, 128>}, {pipeline_mode = #tpu.pipeline_mode<synchronous>, transform_indices = @transform_1, window_bounds = array<i64: 128, 512>}, {pipeline_mode = #tpu.pipeline_mode<synchronous>, transform_indices = @transform_2, window_bounds = array<i64: 1, 512>}, {pipeline_mode = #tpu.pipeline_mode<synchronous>, transform_indices = @transform_3, window_bounds = array<i64: 512, 256>}, {pipeline_mode = #tpu.pipeline_mode<synchronous>, transform_indices = @transform_4, window_bounds = array<i64: 1, 256>}, {transform_indices = @transform_5, window_bounds = array<i64: 8, 256>}]} {
    %c0 = arith.constant 0 : index
    %c0_0 = arith.constant 0 : index
    %0 = vector.load %arg1[%c0, %c0_0] : memref<8x128xf32, #tpu.memory_space<vmem>>, vector<8x128xf32>
    %c0_1 = arith.constant 0 : index
    %c0_2 = arith.constant 0 : index
    %1 = vector.load %arg2[%c0_1, %c0_2] : memref<128x512xf32, #tpu.memory_space<vmem>>, vector<128x512xf32>
    %cst = arith.constant dense<0.000000e+00> : vector<8x512xf32>
    %2 = tpu.matmul %0, %1, %cst {dimension_numbers = #tpu.dot_dimension_numbers<[1], [0], [0], [1], [0, 0, 1, 1], [], []>} : vector<8x128xf32>, vector<128x512xf32>, vector<8x512xf32> -> vector<8x512xf32>
    %c0_3 = arith.constant 0 : index
    %c0_4 = arith.constant 0 : index
    %3 = vector.load %arg3[%c0_3, %c0_4] : memref<1x512xf32, #tpu.memory_space<vmem>>, vector<1x512xf32>
    %4 = vector.broadcast %3 : vector<1x512xf32> to vector<8x512xf32>
    %5 = arith.addf %2, %4 : vector<8x512xf32>
    %cst_5 = arith.constant 1.000000e-01 : f32
    %6 = vector.broadcast %cst_5 : f32 to vector<8x512xf32>
    %7 = arith.mulf %6, %5 : vector<8x512xf32>
    %cst_6 = arith.constant 0.899999976 : f32
    %8 = vector.broadcast %cst_6 : f32 to vector<8x512xf32>
    %9 = arith.subf %7, %8 : vector<8x512xf32>
    %cst_7 = arith.constant 0.899999976 : f32
    %10 = vector.broadcast %cst_7 : f32 to vector<8x512xf32>
    %11 = arith.addf %7, %10 : vector<8x512xf32>
    %12 = arith.minimumf %11, %5 : vector<8x512xf32>
    %13 = arith.maximumf %9, %12 : vector<8x512xf32>
    %c0_8 = arith.constant 0 : index
    %c0_9 = arith.constant 0 : index
    %14 = vector.load %arg4[%c0_8, %c0_9] : memref<512x256xf32, #tpu.memory_space<vmem>>, vector<512x256xf32>
    %cst_10 = arith.constant dense<0.000000e+00> : vector<8x256xf32>
    %15 = tpu.matmul %13, %14, %cst_10 {dimension_numbers = #tpu.dot_dimension_numbers<[1], [0], [0], [1], [0, 0, 1, 1], [], []>} : vector<8x512xf32>, vector<512x256xf32>, vector<8x256xf32> -> vector<8x256xf32>
    %c0_11 = arith.constant 0 : index
    %c0_12 = arith.constant 0 : index
    %16 = vector.load %arg5[%c0_11, %c0_12] : memref<1x256xf32, #tpu.memory_space<vmem>>, vector<1x256xf32>
    %17 = vector.broadcast %16 : vector<1x256xf32> to vector<8x256xf32>
    %18 = arith.addf %15, %17 : vector<8x256xf32>
    %cst_13 = arith.constant 1.000000e-01 : f32
    %19 = vector.broadcast %cst_13 : f32 to vector<8x256xf32>
    %20 = arith.mulf %19, %18 : vector<8x256xf32>
    %cst_14 = arith.constant 0.899999976 : f32
    %21 = vector.broadcast %cst_14 : f32 to vector<8x256xf32>
    %22 = arith.subf %20, %21 : vector<8x256xf32>
    %cst_15 = arith.constant 0.899999976 : f32
    %23 = vector.broadcast %cst_15 : f32 to vector<8x256xf32>
    %24 = arith.addf %20, %23 : vector<8x256xf32>
    %25 = arith.minimumf %24, %18 : vector<8x256xf32>
    %26 = arith.maximumf %22, %25 : vector<8x256xf32>
    %c0_16 = arith.constant 0 : index
    %c0_17 = arith.constant 0 : index
    %27 = vector.load %arg6[%c0_16, %c0_17] : memref<8x256xf32, #tpu.memory_space<vmem>>, vector<8x256xf32>
    tpu.vector_store %arg6[%c0_16, %c0_17], %26 {strides = array<i32>} : memref<8x256xf32, #tpu.memory_space<vmem>>, vector<8x256xf32>,
    return
  }
  func.func @transform_0(%arg0: i32) -> (i32, i32) {
    %c0_i32 = arith.constant 0 : i32
    %c0_i32_0 = arith.constant 0 : i32
    return %arg0, %c0_i32 : i32, i32
  }
  func.func @transform_1(%arg0: i32) -> (i32, i32) {
    %c0_i32 = arith.constant 0 : i32
    %c0_i32_0 = arith.constant 0 : i32
    %c0_i32_1 = arith.constant 0 : i32
    return %c0_i32, %c0_i32_0 : i32, i32
  }
  func.func @transform_2(%arg0: i32) -> (i32, i32) {
    %c0_i32 = arith.constant 0 : i32
    %c0_i32_0 = arith.constant 0 : i32
    %c0_i32_1 = arith.constant 0 : i32
    return %c0_i32, %c0_i32_0 : i32, i32
  }
  func.func @transform_3(%arg0: i32) -> (i32, i32) {
    %c0_i32 = arith.constant 0 : i32
    %c0_i32_0 = arith.constant 0 : i32
    %c0_i32_1 = arith.constant 0 : i32
    return %c0_i32, %c0_i32_0 : i32, i32
  }
  func.func @transform_4(%arg0: i32) -> (i32, i32) {
    %c0_i32 = arith.constant 0 : i32
    %c0_i32_0 = arith.constant 0 : i32
    %c0_i32_1 = arith.constant 0 : i32
    return %c0_i32, %c0_i32_0 : i32, i32
  }
  func.func @transform_5(%arg0: i32) -> (i32, i32) {
    %c0_i32 = arith.constant 0 : i32
    %c0_i32_0 = arith.constant 0 : i32
    return %arg0, %c0_i32 : i32, i32
  }
}

</mosaic_0001>

<llo_original>
// kernel: tpu_custom_call.1
$region0: #{tpu_custom_call.1}
  #allocation0 [shape = 'u32[]', space=smem, size = 0x4, offset = 0x4, fixed_abs, tag = 'smem constant byte address 0x4 - core index']
  #allocation1 [shape = 'u32[72,128]{1,0:T(1,128)}', space=vmem, size = 0x9000, scoped, tag = 'internal scratch']
  %s0 = inlined_call_operand.hbm [shape: f32[16,128], index: 0, kind: input, shape index: {}]
  %s1 = inlined_call_operand.hbm [shape: f32[128,512], index: 1, kind: input, shape index: {}]
  %s2 = inlined_call_operand.hbm [shape: f32[1,512], index: 2, kind: input, shape index: {}]
  %s3 = inlined_call_operand.hbm [shape: f32[512,256], index: 3, kind: input, shape index: {}]
  %s4 = inlined_call_operand.vmem [shape: f32[1,256], index: 4, kind: input, shape index: {}]
  %s5 = inlined_call_operand.hbm [shape: f32[16,256], index: 5, kind: output, shape index: {}]
  %s6 = sld [smem:[#allocation0]]
  $region69: #{tpu_custom_call.1} parent=0
    _
  %s8 = ssub.s32 1, %s6
  %s9 = scalar_select 0, %s8, %s6
  $region1: #{tpu_custom_call.1} parent=0
    #allocation2 [shape = 'u8[8192]{0}', space=vmem, size = 0x2000, scoped, tag = 'input window, operand 0']
    #allocation3 [shape = 's32[2]{0}', space=sflag, size = 0x8, scoped, tag = 'scoped memory for tpu_custom_call.1']
    #allocation4 [shape = 's32[2]{0}', space=sflag, size = 0x8, scoped, tag = 'scoped memory for tpu_custom_call.1']
    #allocation5 [shape = 'u8[262144]{0}', space=vmem, size = 0x40000, scoped, tag = 'input window, operand 1, single buffered']
    #allocation6 [shape = 's32[1]{0}', space=sflag, size = 0x4, scoped, tag = 'scoped memory for tpu_custom_call.1']
    #allocation7 [shape = 'u8[2048]{0}', space=vmem, size = 0x800, scoped, tag = 'input window, operand 2, single buffered']
    #allocation8 [shape = 'u8[524288]{0}', space=vmem, size = 0x80000, scoped, tag = 'input window, operand 3, single buffered']
    #allocation9 [shape = 's32[1]{0}', space=sflag, size = 0x4, scoped, tag = 'scoped memory for tpu_custom_call.1']
    #allocation10 [shape = 'u8[16384]{0}', space=vmem, size = 0x4000, scoped, tag = 'output window, operand 0']
    %10 = vsyncpa [#allocation3], 0
    %s11 = scalar_lea.sflag [#allocation3], 1
    %12 = vsyncpa %s11, 0
    %13 = vsyncpa [#allocation6], 0
    %14 = vsyncpa [#allocation9], 0
    %15 = vsyncpa [#allocation4], 0
    %s16 = scalar_lea.sflag [#allocation4], 1
    %17 = vsyncpa %s16, 0
    loop: start=0, step=1, limit=4
    $region2: #{tpu_custom_call.1} parent=1 // loop_pre_header
      _
    $region3: #{tpu_custom_call.1} parent=1 // loop_header
      %s19 = sphi 0, %s23
      %p20 = scmp.ge.s32.totalorder %s19, 4
      %s29 = sphi 0, %s31
      %s32 = sphi 0, %s29
      %s33 = sphi 0, %s32
      %s49 = sphi 0, %s33
      %s53 = sphi 0, %s53
      %s55 = sphi 0, %s53
      %s56 = sphi 0, %s55
      %s70 = sphi 0, %s56
      %s74 = sphi 0, %s74
      %s76 = sphi 0, %s74
      %s77 = sphi 0, %s76
      %s91 = sphi 0, %s77
      %s95 = sphi 0, %s95
      %s97 = sphi 0, %s95
      %s98 = sphi 0, %s97
      %s112 = sphi 0, %s98
      %s116 = sphi 0, %s116
      %s118 = sphi 0, %s116
      %s119 = sphi 0, %s118
      %s133 = sphi 0, %s119
      %s139 = sphi 0, %s141
      %s142 = sphi 0, %s139
      %s143 = sphi 0, %s142
      %s159 = sphi 0, %s143
    $region4: #{tpu_custom_call.1} parent=1 // loop_header_branch
      %22 = sbr.rel (%p20) target = $region8
    $region5: #{tpu_custom_call.1} parent=1 // loop_body
      %s24 = ssub.s32 %s19, 1
      %s25 = ssub.s32 %s19, 2
      %s26 = sadd.s32 %s19, 1
      %s27 = ssub.s32 %s19, %s26
      %p28 = scmp.eq.s32.totalorder %s27, 0
      %s30 = sadd.s32 %s29, 1
      %s31 = scalar_select %p28, %s29, %s30
      %p34 = pneg %p28
      %p35 = scmp.eq.s32.totalorder %s19, 1
      %p36 = por %p34, %p35
      %p37 = scmp.ne.s32.totalorder %s29, %s32
      %p38 = scmp.eq.s32.totalorder %s19, 0
      %p39 = por %p37, %p38
      %p40 = scmp.ne.s32.totalorder %s29, %s32
      %p41 = scmp.eq.s32.totalorder %s24, 1
      %p42 = por %p40, %p41
      %p43 = scmp.ne.s32.totalorder %s32, %s33
      %p44 = scmp.eq.s32.totalorder %s24, 0
      %p45 = por %p43, %p44
      %p46 = scmp.ne.s32.totalorder %s32, %s33
      %p47 = scmp.eq.s32.totalorder %s25, 1
      %p48 = por %p46, %p47
      %p50 = scmp.ne.s32.totalorder %s33, %s49
      %p51 = scmp.eq.s32.totalorder %s25, 0
      %p52 = por %p50, %p51
      %s54 = sadd.s32 %s53, 1
      %p57 = scmp.eq.s32.totalorder %s19, 1
      %p58 = scmp.ne.s32.totalorder %s53, %s55
      %p59 = scmp.eq.s32.totalorder %s19, 0
      %p60 = por %p58, %p59
      %p61 = scmp.ne.s32.totalorder %s53, %s55
      %p62 = scmp.eq.s32.totalorder %s24, 1
      %p63 = por %p61, %p62
      %p64 = scmp.ne.s32.totalorder %s55, %s56
      %p65 = scmp.eq.s32.totalorder %s24, 0
      %p66 = por %p64, %p65
      %p67 = scmp.ne.s32.totalorder %s55, %s56
      %p68 = scmp.eq.s32.totalorder %s25, 1
      %p69 = por %p67, %p68
      %p71 = scmp.ne.s32.totalorder %s56, %s70
      %p72 = scmp.eq.s32.totalorder %s25, 0
      %p73 = por %p71, %p72
      %s75 = sadd.s32 %s74, 1
      %p78 = scmp.eq.s32.totalorder %s19, 1
      %p79 = scmp.ne.s32.totalorder %s74, %s76
      %p80 = scmp.eq.s32.totalorder %s19, 0
      %p81 = por %p79, %p80
      %p82 = scmp.ne.s32.totalorder %s74, %s76
      %p83 = scmp.eq.s32.totalorder %s24, 1
      %p84 = por %p82, %p83
      %p85 = scmp.ne.s32.totalorder %s76, %s77
      %p86 = scmp.eq.s32.totalorder %s24, 0
      %p87 = por %p85, %p86
      %p88 = scmp.ne.s32.totalorder %s76, %s77
      %p89 = scmp.eq.s32.totalorder %s25, 1
      %p90 = por %p88, %p89
      %p92 = scmp.ne.s32.totalorder %s77, %s91
      %p93 = scmp.eq.s32.totalorder %s25, 0
      %p94 = por %p92, %p93
      %s96 = sadd.s32 %s95, 1
      %p99 = scmp.eq.s32.totalorder %s19, 1
      %p100 = scmp.ne.s32.totalorder %s95, %s97
      %p101 = scmp.eq.s32.totalorder %s19, 0
      %p102 = por %p100, %p101
      %p103 = scmp.ne.s32.totalorder %s95, %s97
      %p104 = scmp.eq.s32.totalorder %s24, 1
      %p105 = por %p103, %p104
      %p106 = scmp.ne.s32.totalorder %s97, %s98
      %p107 = scmp.eq.s32.totalorder %s24, 0
      %p108 = por %p106, %p107
      %p109 = scmp.ne.s32.totalorder %s97, %s98
      %p110 = scmp.eq.s32.totalorder %s25, 1
      %p111 = por %p109, %p110
      %p113 = scmp.ne.s32.totalorder %s98, %s112
      %p114 = scmp.eq.s32.totalorder %s25, 0
      %p115 = por %p113, %p114
      %s117 = sadd.s32 %s116, 1
      %p120 = scmp.eq.s32.totalorder %s19, 1
      %p121 = scmp.ne.s32.totalorder %s116, %s118
      %p122 = scmp.eq.s32.totalorder %s19, 0
      %p123 = por %p121, %p122
      %p124 = scmp.ne.s32.totalorder %s116, %s118
      %p125 = scmp.eq.s32.totalorder %s24, 1
      %p126 = por %p124, %p125
      %p127 = scmp.ne.s32.totalorder %s118, %s119
      %p128 = scmp.eq.s32.totalorder %s24, 0
      %p129 = por %p127, %p128
      %p130 = scmp.ne.s32.totalorder %s118, %s119
      %p131 = scmp.eq.s32.totalorder %s25, 1
      %p132 = por %p130, %p131
      %p134 = scmp.ne.s32.totalorder %s119, %s133
      %p135 = scmp.eq.s32.totalorder %s25, 0
      %p136 = por %p134, %p135
      %s137 = ssub.s32 %s19, %s26
      %p138 = scmp.eq.s32.totalorder %s137, 0
      %s140 = sadd.s32 %s139, 1
      %s141 = scalar_select %p138, %s139, %s140
      %p144 = pneg %p138
      %p145 = scmp.eq.s32.totalorder %s19, 1
      %p146 = por %p144, %p145
      %p147 = scmp.ne.s32.totalorder %s139, %s142
      %p148 = scmp.eq.s32.totalorder %s19, 0
      %p149 = por %p147, %p148
      %p150 = scmp.ne.s32.totalorder %s139, %s142
      %p151 = scmp.eq.s32.totalorder %s24, 1
      %p152 = por %p150, %p151
      %p153 = scmp.ne.s32.totalorder %s142, %s143
      %p154 = scmp.eq.s32.totalorder %s24, 0
      %p155 = por %p153, %p154
      %p156 = scmp.ne.s32.totalorder %s142, %s143
      %p157 = scmp.eq.s32.totalorder %s25, 1
      %p158 = por %p156, %p157
      %p160 = scmp.ne.s32.totalorder %s143, %s159
      %p161 = scmp.eq.s32.totalorder %s25, 0
      %p162 = por %p160, %p161
      %p163 = scmp.le.s32.totalorder 1, %s19
      %p164 = scmp.lt.s32.totalorder %s19, 3
      %p165 = pnand %p163, %p164
      %p166 = pneg %p165
      // Predicated region
      $region9: #{tpu_custom_call.1} parent=5 // pred_check
        _
      $region10: #{tpu_custom_call.1} parent=5 // pred_check_branch
        %168 = sbr.rel (%p165) target = $region12
      $region11: #{tpu_custom_call.1} parent=5 // pred_region
        %s169 = ssub.s32 %s19, 1
        // Predicated region
        $region13: #{tpu_custom_call.1} parent=11 // pred_check
          %p170 = pneg %p66
        $region14: #{tpu_custom_call.1} parent=11 // pred_check_branch
          %172 = sbr.rel (%p170) target = $region16
        $region15: #{tpu_custom_call.1} parent=11 // pred_region
          %174 = vsyncadd [#allocation6], 0
          %s175 = sshll.u32 %s1, 4
          %s176 = int_to_ptr.hbm [resolvable:$true] %s175
          %s177 = sshll.u32 [#allocation5], 4
          %s178 = int_to_ptr.vmem [resolvable:$true] %s177
          %183 = dma.hbm_to_vmem [thread:$0]  %s176, 8192, %s178, [#allocation6], 512, 512, 32
        $region16: #{tpu_custom_call.1} parent=11 // pred_fallthru
          _
        // Predicated region
        $region17: #{tpu_custom_call.1} parent=11 // pred_check
          %p184 = pneg %p87
        $region18: #{tpu_custom_call.1} parent=11 // pred_check_branch
          %186 = sbr.rel (%p184) target = $region20
        $region19: #{tpu_custom_call.1} parent=11 // pred_region
          %188 = vsyncadd [#allocation6], 0
          %s190 = sshll.u32 %s2, 4
          %s191 = int_to_ptr.hbm [resolvable:$true] %s190
          %s192 = sshll.u32 [#allocation7], 4
          %s193 = int_to_ptr.vmem [resolvable:$true] %s192
          %195 = dma.hbm_to_vmem [thread:$0]  %s191, 64, %s193, [#allocation6]
        $region20: #{tpu_custom_call.1} parent=11 // pred_fallthru
          _
        // Predicated region
        $region21: #{tpu_custom_call.1} parent=11 // pred_check
          %p196 = pneg %p108
        $region22: #{tpu_custom_call.1} parent=11 // pred_check_branch
          %198 = sbr.rel (%p196) target = $region24
        $region23: #{tpu_custom_call.1} parent=11 // pred_region
          %200 = vsyncadd [#allocation9], 0
          %s201 = sshll.u32 %s3, 4
          %s202 = int_to_ptr.hbm [resolvable:$true] %s201
          %s203 = sshll.u32 [#allocation8], 4
          %s204 = int_to_ptr.vmem [resolvable:$true] %s203
          %209 = dma.hbm_to_vmem [thread:$0]  %s202, 16384, %s204, [#allocation9], 256, 256, 16
        $region24: #{tpu_custom_call.1} parent=11 // pred_fallthru
          _
        // Predicated region
        $region25: #{tpu_custom_call.1} parent=11 // pred_check
          %p210 = pneg %p129
        $region26: #{tpu_custom_call.1} parent=11 // pred_check_branch
          %212 = sbr.rel (%p210) target = $region28
        $region27: #{tpu_custom_call.1} parent=11 // pred_region
          _
        $region28: #{tpu_custom_call.1} parent=11 // pred_fallthru
          _
      $region12: #{tpu_custom_call.1} parent=5 // pred_fallthru
        _
      %p213 = scmp.lt.s32.totalorder %s19, 2
      // Predicated region
      $region29: #{tpu_custom_call.1} parent=5 // pred_check
        %p214 = pneg %p213
      $region30: #{tpu_custom_call.1} parent=5 // pred_check_branch
        %216 = sbr.rel (%p214) target = $region32
      $region31: #{tpu_custom_call.1} parent=5 // pred_region
        // Predicated region
        $region33: #{tpu_custom_call.1} parent=31 // pred_check
          %p217 = pneg %p39
        $region34: #{tpu_custom_call.1} parent=31 // pred_check_branch
          %219 = sbr.rel (%p217) target = $region36
        $region35: #{tpu_custom_call.1} parent=31 // pred_region
          %s220 = sand.u32 %s29, 1
          %s221 = scalar_lea.sflag [#allocation3], %s220
          %s222 = sand.u32 %s29, 1
          %s223 = smul.addr %s222, 8
          %s224 = scalar_lea.vmem [#allocation2], %s223
          %226 = vsyncadd %s221, 0
          %s227 = smul.addr %s19, 8
          %s228 = scalar_lea.hbm %s0, %s227
          %s230 = sshll.u32 %s228, 4
          %s231 = int_to_ptr.hbm [resolvable:$true] %s230
          %s232 = sshll.u32 %s224, 4
          %s233 = int_to_ptr.vmem [resolvable:$true] %s232
          %235 = dma.hbm_to_vmem [thread:$0]  %s231, 128, %s233, %s221
        $region36: #{tpu_custom_call.1} parent=31 // pred_fallthru
          _
      $region32: #{tpu_custom_call.1} parent=5 // pred_fallthru
        _
      %p236 = scmp.le.s32.totalorder 1, %s19
      %p237 = scmp.lt.s32.totalorder %s19, 3
      %p238 = pnand %p236, %p237
      %p239 = pneg %p238
      // Predicated region
      $region37: #{tpu_custom_call.1} parent=5 // pred_check
        _
      $region38: #{tpu_custom_call.1} parent=5 // pred_check_branch
        %241 = sbr.rel (%p238) target = $region40
      $region39: #{tpu_custom_call.1} parent=5 // pred_region
        %s242 = ssub.s32 %s19, 1
        %s243 = sand.u32 %s32, 1
        %s244 = scalar_lea.sflag [#allocation3], %s243
        %s245 = sand.u32 %s32, 1
        %s246 = smul.addr %s245, 8
        %s247 = scalar_lea.vmem [#allocation2], %s246
        // Predicated region
        $region41: #{tpu_custom_call.1} parent=39 // pred_check
          %p248 = pneg %p45
        $region42: #{tpu_custom_call.1} parent=39 // pred_check_branch
          %250 = sbr.rel (%p248) target = $region44
        $region43: #{tpu_custom_call.1} parent=39 // pred_region
          %252 = dma.done %s244, 128
        $region44: #{tpu_custom_call.1} parent=39 // pred_fallthru
          _
        // Predicated region
        $region45: #{tpu_custom_call.1} parent=39 // pred_check
          %p253 = pneg %p66
        $region46: #{tpu_custom_call.1} parent=39 // pred_check_branch
          %255 = sbr.rel (%p253) target = $region48
        $region47: #{tpu_custom_call.1} parent=39 // pred_region
          %257 = dma.done [#allocation6], 8192
        $region48: #{tpu_custom_call.1} parent=39 // pred_fallthru
          _
        // Predicated region
        $region49: #{tpu_custom_call.1} parent=39 // pred_check
          %p258 = pneg %p87
        $region50: #{tpu_custom_call.1} parent=39 // pred_check_branch
          %260 = sbr.rel (%p258) target = $region52
        $region51: #{tpu_custom_call.1} parent=39 // pred_region
          %262 = dma.done [#allocation6], 64
        $region52: #{tpu_custom_call.1} parent=39 // pred_fallthru
          _
        // Predicated region
        $region53: #{tpu_custom_call.1} parent=39 // pred_check
          %p263 = pneg %p108
        $region54: #{tpu_custom_call.1} parent=39 // pred_check_branch
          %265 = sbr.rel (%p263) target = $region56
        $region55: #{tpu_custom_call.1} parent=39 // pred_region
          %267 = dma.done [#allocation9], 16384
        $region56: #{tpu_custom_call.1} parent=39 // pred_fallthru
          _
        %s268 = sand.u32 %s32, 1
        %s269 = scalar_lea.sflag [#allocation3], %s268
        %s270 = sand.u32 %s32, 1
        %s271 = smul.addr %s270, 8
        %s272 = scalar_lea.vmem [#allocation2], %s271
        %p273 = pneg %p45
        %p274 = pneg %p42
        %p275 = pneg %p66
        %p276 = pneg %p63
        %p277 = pneg %p87
        %p278 = pneg %p84
        %p279 = pneg %p108
        %p280 = pneg %p105
        %p281 = pneg %p129
        %p282 = pneg %p126
        %p283 = pneg %p155
        %p284 = pneg %p152
        %s285 = sand.u32 %s142, 1
        %s286 = scalar_lea.sflag [#allocation4], %s285
        %s287 = sand.u32 %s142, 1
        %s288 = smul.addr %s287, 16
        %s289 = scalar_lea.vmem [#allocation10], %s288
        %v290 = vld [vmem:[%s247] sm:$0xff]
        %v291 = vld [vmem:[#allocation5] sm:$0xff]
        %v292 = vld [vmem:[#allocation5 + $0x8] sm:$0xff]
        %v293 = vld [vmem:[#allocation5 + $0x10] sm:$0xff]
        %v294 = vld [vmem:[#allocation5 + $0x18] sm:$0xff]
        %v295 = vld [vmem:[#allocation5 + $0x20] sm:$0xff]
        %v296 = vld [vmem:[#allocation5 + $0x28] sm:$0xff]
        %v297 = vld [vmem:[#allocation5 + $0x30] sm:$0xff]
        %v298 = vld [vmem:[#allocation5 + $0x38] sm:$0xff]
        %v299 = vld [vmem:[#allocation5 + $0x40] sm:$0xff]
        %v300 = vld [vmem:[#allocation5 + $0x48] sm:$0xff]
        %v301 = vld [vmem:[#allocation5 + $0x50] sm:$0xff]
        %v302 = vld [vmem:[#allocation5 + $0x58] sm:$0xff]
        %v303 = vld [vmem:[#allocation5 + $0x60] sm:$0xff]
        %v304 = vld [vmem:[#allocation5 + $0x68] sm:$0xff]
        %v305 = vld [vmem:[#allocation5 + $0x70] sm:$0xff]
        %v306 = vld [vmem:[#allocation5 + $0x78] sm:$0xff]
        %v307 = vld [vmem:[#allocation5 + $0x80] sm:$0xff]
        %v308 = vld [vmem:[#allocation5 + $0x88] sm:$0xff]
        %v309 = vld [vmem:[#allocation5 + $0x90] sm:$0xff]
        %v310 = vld [vmem:[#allocation5 + $0x98] sm:$0xff]
        %v311 = vld [vmem:[#allocation5 + $0xa0] sm:$0xff]
        %v312 = vld [vmem:[#allocation5 + $0xa8] sm:$0xff]
        %v313 = vld [vmem:[#allocation5 + $0xb0] sm:$0xff]
        %v314 = vld [vmem:[#allocation5 + $0xb8] sm:$0xff]
        %v315 = vld [vmem:[#allocation5 + $0xc0] sm:$0xff]
        %v316 = vld [vmem:[#allocation5 + $0xc8] sm:$0xff]
        %v317 = vld [vmem:[#allocation5 + $0xd0] sm:$0xff]
        %v318 = vld [vmem:[#allocation5 + $0xd8] sm:$0xff]
        %v319 = vld [vmem:[#allocation5 + $0xe0] sm:$0xff]
        %v320 = vld [vmem:[#allocation5 + $0xe8] sm:$0xff]
        %v321 = vld [vmem:[#allocation5 + $0xf0] sm:$0xff]
        %v322 = vld [vmem:[#allocation5 + $0xf8] sm:$0xff]
        %v323 = vld [vmem:[#allocation5 + $0x100] sm:$0xff]
        %v324 = vld [vmem:[#allocation5 + $0x108] sm:$0xff]
        %v325 = vld [vmem:[#allocation5 + $0x110] sm:$0xff]
        %v326 = vld [vmem:[#allocation5 + $0x118] sm:$0xff]
        %v327 = vld [vmem:[#allocation5 + $0x120] sm:$0xff]
        %v328 = vld [vmem:[#allocation5 + $0x128] sm:$0xff]
        %v329 = vld [vmem:[#allocation5 + $0x130] sm:$0xff]
        %v330 = vld [vmem:[#allocation5 + $0x138] sm:$0xff]
        %v331 = vld [vmem:[#allocation5 + $0x140] sm:$0xff]
        %v332 = vld [vmem:[#allocation5 + $0x148] sm:$0xff]
        %v333 = vld [vmem:[#allocation5 + $0x150] sm:$0xff]
        %v334 = vld [vmem:[#allocation5 + $0x158] sm:$0xff]
        %v335 = vld [vmem:[#allocation5 + $0x160] sm:$0xff]
        %v336 = vld [vmem:[#allocation5 + $0x168] sm:$0xff]
        %v337 = vld [vmem:[#allocation5 + $0x170] sm:$0xff]
        %v338 = vld [vmem:[#allocation5 + $0x178] sm:$0xff]
        %v339 = vld [vmem:[#allocation5 + $0x180] sm:$0xff]
        %v340 = vld [vmem:[#allocation5 + $0x188] sm:$0xff]
        %v341 = vld [vmem:[#allocation5 + $0x190] sm:$0xff]
        %v342 = vld [vmem:[#allocation5 + $0x198] sm:$0xff]
        %v343 = vld [vmem:[#allocation5 + $0x1a0] sm:$0xff]
        %v344 = vld [vmem:[#allocation5 + $0x1a8] sm:$0xff]
        %v345 = vld [vmem:[#allocation5 + $0x1b0] sm:$0xff]
        %v346 = vld [vmem:[#allocation5 + $0x1b8] sm:$0xff]
        %v347 = vld [vmem:[#allocation5 + $0x1c0] sm:$0xff]
        %v348 = vld [vmem:[#allocation5 + $0x1c8] sm:$0xff]
        %v349 = vld [vmem:[#allocation5 + $0x1d0] sm:$0xff]
        %v350 = vld [vmem:[#allocation5 + $0x1d8] sm:$0xff]
        %v351 = vld [vmem:[#allocation5 + $0x1e0] sm:$0xff]
        %v352 = vld [vmem:[#allocation5 + $0x1e8] sm:$0xff]
        %v353 = vld [vmem:[#allocation5 + $0x1f0] sm:$0xff]
        %v354 = vld [vmem:[#allocation5 + $0x1f8] sm:$0xff]
        %v355 = vld [vmem:[#allocation7] sm:$0xf]
        %v357 = vperm.slane %v355, 0
        %v358 = vperm.slane %v355, 1
        %v359 = vperm.slane %v355, 2
        %v360 = vperm.slane %v355, 3
        %365 = vmatpush.msra.mxu0 %v351
        %366 = vmatpush.msra.mxu0 %v347
        %367 = vmatpush.msra.mxu0 %v343
        %368 = vmatpush.msra.mxu0 %v339
        %369 = vmatpush.msra.mxu0 %v335
        %370 = vmatpush.msra.mxu0 %v331
        %371 = vmatpush.msra.mxu0 %v327
        %372 = vmatpush.msra.mxu0 %v323
        %373 = vmatpush.msra.mxu0 %v319
        %374 = vmatpush.msra.mxu0 %v315
        %375 = vmatpush.msra.mxu0 %v311
        %376 = vmatpush.msra.mxu0 %v307
        %377 = vmatpush.msra.mxu0 %v303
        %378 = vmatpush.msra.mxu0 %v299
        %379 = vmatpush.msra.mxu0 %v295
        %380 = vmatpush.msra.mxu0 %v291
        %381 = vmatmul.f32.gmra.mxu0 %v290
        %v382 = vpop.f32.mrf.mxu0
        %v383 = vadd.f32 %v357, %v382
        %384 = vdwg.mxu0
        %385 = vmatpush.msra.mxu0 %v352
        %386 = vmatpush.msra.mxu0 %v348
        %387 = vmatpush.msra.mxu0 %v344
        %388 = vmatpush.msra.mxu0 %v340
        %389 = vmatpush.msra.mxu0 %v336
        %390 = vmatpush.msra.mxu0 %v332
        %391 = vmatpush.msra.mxu0 %v328
        %392 = vmatpush.msra.mxu0 %v324
        %393 = vmatpush.msra.mxu0 %v320
        %394 = vmatpush.msra.mxu0 %v316
        %395 = vmatpush.msra.mxu0 %v312
        %396 = vmatpush.msra.mxu0 %v308
        %397 = vmatpush.msra.mxu0 %v304
        %398 = vmatpush.msra.mxu0 %v300
        %399 = vmatpush.msra.mxu0 %v296
        %400 = vmatpush.msra.mxu0 %v292
        %401 = vmatmul.f32.gmra.mxu0 %v290
        %v402 = vpop.f32.mrf.mxu0
        %v403 = vadd.f32 %v358, %v402
        %404 = vdwg.mxu0
        %405 = vmatpush.msra.mxu0 %v353
        %406 = vmatpush.msra.mxu0 %v349
        %407 = vmatpush.msra.mxu0 %v345
        %408 = vmatpush.msra.mxu0 %v341
        %409 = vmatpush.msra.mxu0 %v337
        %410 = vmatpush.msra.mxu0 %v333
        %411 = vmatpush.msra.mxu0 %v329
        %412 = vmatpush.msra.mxu0 %v325
        %413 = vmatpush.msra.mxu0 %v321
        %414 = vmatpush.msra.mxu0 %v317
        %415 = vmatpush.msra.mxu0 %v313
        %416 = vmatpush.msra.mxu0 %v309
        %417 = vmatpush.msra.mxu0 %v305
        %418 = vmatpush.msra.mxu0 %v301
        %419 = vmatpush.msra.mxu0 %v297
        %420 = vmatpush.msra.mxu0 %v293
        %421 = vmatmul.f32.gmra.mxu0 %v290
        %v422 = vpop.f32.mrf.mxu0
        %v423 = vadd.f32 %v359, %v422
        %424 = vdwg.mxu0
        %425 = vmatpush.msra.mxu0 %v354
        %426 = vmatpush.msra.mxu0 %v350
        %427 = vmatpush.msra.mxu0 %v346
        %428 = vmatpush.msra.mxu0 %v342
        %429 = vmatpush.msra.mxu0 %v338
        %430 = vmatpush.msra.mxu0 %v334
        %431 = vmatpush.msra.mxu0 %v330
        %432 = vmatpush.msra.mxu0 %v326
        %433 = vmatpush.msra.mxu0 %v322
        %434 = vmatpush.msra.mxu0 %v318
        %435 = vmatpush.msra.mxu0 %v314
        %436 = vmatpush.msra.mxu0 %v310
        %437 = vmatpush.msra.mxu0 %v306
        %438 = vmatpush.msra.mxu0 %v302
        %439 = vmatpush.msra.mxu0 %v298
        %440 = vmatpush.msra.mxu0 %v294
        %441 = vmatmul.f32.gmra.mxu0 %v290
        %v442 = vpop.f32.mrf.mxu0
        %v443 = vadd.f32 %v360, %v442
        %444 = vdwg.mxu0
        %v445 = vmul.f32 %v383, 0.1
        %v446 = vmul.f32 %v403, 0.1
        %v447 = vmul.f32 %v423, 0.1
        %v448 = vmul.f32 %v443, 0.1
        %v449 = vsub.f32 %v445, 0.9
        %v450 = vsub.f32 %v446, 0.9
        %v451 = vsub.f32 %v447, 0.9
        %v452 = vsub.f32 %v448, 0.9
        %v453 = vadd.f32 %v445, 0.9
        %v454 = vadd.f32 %v446, 0.9
        %v455 = vadd.f32 %v447, 0.9
        %v456 = vadd.f32 %v448, 0.9
        %v457 = vmin.f32 %v453, %v383
        %v458 = vmin.f32 %v454, %v403
        %v459 = vmin.f32 %v455, %v423
        %v460 = vmin.f32 %v456, %v443
        %v461 = vmax.f32 %v449, %v457
        %v462 = vmax.f32 %v450, %v458
        %v463 = vmax.f32 %v451, %v459
        %v464 = vmax.f32 %v452, %v460
        %v465 = vld [vmem:[#allocation8] sm:$0xff]
        %v466 = vld [vmem:[#allocation8 + $0x8] sm:$0xff]
        %v467 = vld [vmem:[#allocation8 + $0x10] sm:$0xff]
        %v468 = vld [vmem:[#allocation8 + $0x18] sm:$0xff]
        %v469 = vld [vmem:[#allocation8 + $0x20] sm:$0xff]
        %v470 = vld [vmem:[#allocation8 + $0x28] sm:$0xff]
        %v471 = vld [vmem:[#allocation8 + $0x30] sm:$0xff]
        %v472 = vld [vmem:[#allocation8 + $0x38] sm:$0xff]
        %v473 = vld [vmem:[#allocation8 + $0x40] sm:$0xff]
        %v474 = vld [vmem:[#allocation8 + $0x48] sm:$0xff]
        %v475 = vld [vmem:[#allocation8 + $0x50] sm:$0xff]
        %v476 = vld [vmem:[#allocation8 + $0x58] sm:$0xff]
        %v477 = vld [vmem:[#allocation8 + $0x60] sm:$0xff]
        %v478 = vld [vmem:[#allocation8 + $0x68] sm:$0xff]
        %v479 = vld [vmem:[#allocation8 + $0x70] sm:$0xff]
        %v480 = vld [vmem:[#allocation8 + $0x78] sm:$0xff]
        %v481 = vld [vmem:[#allocation8 + $0x80] sm:$0xff]
        %v482 = vld [vmem:[#allocation8 + $0x88] sm:$0xff]
        %v483 = vld [vmem:[#allocation8 + $0x90] sm:$0xff]
        %v484 = vld [vmem:[#allocation8 + $0x98] sm:$0xff]
        %v485 = vld [vmem:[#allocation8 + $0xa0] sm:$0xff]
        %v486 = vld [vmem:[#allocation8 + $0xa8] sm:$0xff]
        %v487 = vld [vmem:[#allocation8 + $0xb0] sm:$0xff]
        %v488 = vld [vmem:[#allocation8 + $0xb8] sm:$0xff]
        %v489 = vld [vmem:[#allocation8 + $0xc0] sm:$0xff]
        %v490 = vld [vmem:[#allocation8 + $0xc8] sm:$0xff]
        %v491 = vld [vmem:[#allocation8 + $0xd0] sm:$0xff]
        %v492 = vld [vmem:[#allocation8 + $0xd8] sm:$0xff]
        %v493 = vld [vmem:[#allocation8 + $0xe0] sm:$0xff]
        %v494 = vld [vmem:[#allocation8 + $0xe8] sm:$0xff]
        %v495 = vld [vmem:[#allocation8 + $0xf0] sm:$0xff]
        %v496 = vld [vmem:[#allocation8 + $0xf8] sm:$0xff]
        %v497 = vld [vmem:[#allocation8 + $0x100] sm:$0xff]
        %v498 = vld [vmem:[#allocation8 + $0x108] sm:$0xff]
        %v499 = vld [vmem:[#allocation8 + $0x110] sm:$0xff]
        %v500 = vld [vmem:[#allocation8 + $0x118] sm:$0xff]
        %v501 = vld [vmem:[#allocation8 + $0x120] sm:$0xff]
        %v502 = vld [vmem:[#allocation8 + $0x128] sm:$0xff]
        %v503 = vld [vmem:[#allocation8 + $0x130] sm:$0xff]
        %v504 = vld [vmem:[#allocation8 + $0x138] sm:$0xff]
        %v505 = vld [vmem:[#allocation8 + $0x140] sm:$0xff]
        %v506 = vld [vmem:[#allocation8 + $0x148] sm:$0xff]
        %v507 = vld [vmem:[#allocation8 + $0x150] sm:$0xff]
        %v508 = vld [vmem:[#allocation8 + $0x158] sm:$0xff]
        %v509 = vld [vmem:[#allocation8 + $0x160] sm:$0xff]
        %v510 = vld [vmem:[#allocation8 + $0x168] sm:$0xff]
        %v511 = vld [vmem:[#allocation8 + $0x170] sm:$0xff]
        %v512 = vld [vmem:[#allocation8 + $0x178] sm:$0xff]
        %v513 = vld [vmem:[#allocation8 + $0x180] sm:$0xff]
        %v514 = vld [vmem:[#allocation8 + $0x188] sm:$0xff]
        %v515 = vld [vmem:[#allocation8 + $0x190] sm:$0xff]
        %v516 = vld [vmem:[#allocation8 + $0x198] sm:$0xff]
        %v517 = vld [vmem:[#allocation8 + $0x1a0] sm:$0xff]
        %v518 = vld [vmem:[#allocation8 + $0x1a8] sm:$0xff]
        %v519 = vld [vmem:[#allocation8 + $0x1b0] sm:$0xff]
        %v520 = vld [vmem:[#allocation8 + $0x1b8] sm:$0xff]
        %v521 = vld [vmem:[#allocation8 + $0x1c0] sm:$0xff]
        %v522 = vld [vmem:[#allocation8 + $0x1c8] sm:$0xff]
        %v523 = vld [vmem:[#allocation8 + $0x1d0] sm:$0xff]
        %v524 = vld [vmem:[#allocation8 + $0x1d8] sm:$0xff]
        %v525 = vld [vmem:[#allocation8 + $0x1e0] sm:$0xff]
        %v526 = vld [vmem:[#allocation8 + $0x1e8] sm:$0xff]
        %v527 = vld [vmem:[#allocation8 + $0x1f0] sm:$0xff]
        %v528 = vld [vmem:[#allocation8 + $0x1f8] sm:$0xff]
        %v529 = vld [vmem:[#allocation8 + $0x200] sm:$0xff]
        %v530 = vld [vmem:[#allocation8 + $0x208] sm:$0xff]
        %v531 = vld [vmem:[#allocation8 + $0x210] sm:$0xff]
        %v532 = vld [vmem:[#allocation8 + $0x218] sm:$0xff]
        %v533 = vld [vmem:[#allocation8 + $0x220] sm:$0xff]
        %v534 = vld [vmem:[#allocation8 + $0x228] sm:$0xff]
        %v535 = vld [vmem:[#allocation8 + $0x230] sm:$0xff]
        %v536 = vld [vmem:[#allocation8 + $0x238] sm:$0xff]
        %v537 = vld [vmem:[#allocation8 + $0x240] sm:$0xff]
        %v538 = vld [vmem:[#allocation8 + $0x248] sm:$0xff]
        %v539 = vld [vmem:[#allocation8 + $0x250] sm:$0xff]
        %v540 = vld [vmem:[#allocation8 + $0x258] sm:$0xff]
        %v541 = vld [vmem:[#allocation8 + $0x260] sm:$0xff]
        %v542 = vld [vmem:[#allocation8 + $0x268] sm:$0xff]
        %v543 = vld [vmem:[#allocation8 + $0x270] sm:$0xff]
        %v544 = vld [vmem:[#allocation8 + $0x278] sm:$0xff]
        %v545 = vld [vmem:[#allocation8 + $0x280] sm:$0xff]
        %v546 = vld [vmem:[#allocation8 + $0x288] sm:$0xff]
        %v547 = vld [vmem:[#allocation8 + $0x290] sm:$0xff]
        %v548 = vld [vmem:[#allocation8 + $0x298] sm:$0xff]
        %v549 = vld [vmem:[#allocation8 + $0x2a0] sm:$0xff]
        %v550 = vld [vmem:[#allocation8 + $0x2a8] sm:$0xff]
        %v551 = vld [vmem:[#allocation8 + $0x2b0] sm:$0xff]
        %v552 = vld [vmem:[#allocation8 + $0x2b8] sm:$0xff]
        %v553 = vld [vmem:[#allocation8 + $0x2c0] sm:$0xff]
        %v554 = vld [vmem:[#allocation8 + $0x2c8] sm:$0xff]
        %v555 = vld [vmem:[#allocation8 + $0x2d0] sm:$0xff]
        %v556 = vld [vmem:[#allocation8 + $0x2d8] sm:$0xff]
        %v557 = vld [vmem:[#allocation8 + $0x2e0] sm:$0xff]
        %v558 = vld [vmem:[#allocation8 + $0x2e8] sm:$0xff]
        %v559 = vld [vmem:[#allocation8 + $0x2f0] sm:$0xff]
        %v560 = vld [vmem:[#allocation8 + $0x2f8] sm:$0xff]
        %v561 = vld [vmem:[#allocation8 + $0x300] sm:$0xff]
        %v562 = vld [vmem:[#allocation8 + $0x308] sm:$0xff]
        %v563 = vld [vmem:[#allocation8 + $0x310] sm:$0xff]
        %v564 = vld [vmem:[#allocation8 + $0x318] sm:$0xff]
        %v565 = vld [vmem:[#allocation8 + $0x320] sm:$0xff]
        %v566 = vld [vmem:[#allocation8 + $0x328] sm:$0xff]
        %v567 = vld [vmem:[#allocation8 + $0x330] sm:$0xff]
        %v568 = vld [vmem:[#allocation8 + $0x338] sm:$0xff]
        %v569 = vld [vmem:[#allocation8 + $0x340] sm:$0xff]
        %v570 = vld [vmem:[#allocation8 + $0x348] sm:$0xff]
        %v571 = vld [vmem:[#allocation8 + $0x350] sm:$0xff]
        %v572 = vld [vmem:[#allocation8 + $0x358] sm:$0xff]
        %v573 = vld [vmem:[#allocation8 + $0x360] sm:$0xff]
        %v574 = vld [vmem:[#allocation8 + $0x368] sm:$0xff]
        %v575 = vld [vmem:[#allocation8 + $0x370] sm:$0xff]
        %v576 = vld [vmem:[#allocation8 + $0x378] sm:$0xff]
        %v577 = vld [vmem:[#allocation8 + $0x380] sm:$0xff]
        %v578 = vld [vmem:[#allocation8 + $0x388] sm:$0xff]
        %v579 = vld [vmem:[#allocation8 + $0x390] sm:$0xff]
        %v580 = vld [vmem:[#allocation8 + $0x398] sm:$0xff]
        %v581 = vld [vmem:[#allocation8 + $0x3a0] sm:$0xff]
        %v582 = vld [vmem:[#allocation8 + $0x3a8] sm:$0xff]
        %v583 = vld [vmem:[#allocation8 + $0x3b0] sm:$0xff]
        %v584 = vld [vmem:[#allocation8 + $0x3b8] sm:$0xff]
        %v585 = vld [vmem:[#allocation8 + $0x3c0] sm:$0xff]
        %v586 = vld [vmem:[#allocation8 + $0x3c8] sm:$0xff]
        %v587 = vld [vmem:[#allocation8 + $0x3d0] sm:$0xff]
        %v588 = vld [vmem:[#allocation8 + $0x3d8] sm:$0xff]
        %v589 = vld [vmem:[#allocation8 + $0x3e0] sm:$0xff]
        %v590 = vld [vmem:[#allocation8 + $0x3e8] sm:$0xff]
        %v591 = vld [vmem:[#allocation8 + $0x3f0] sm:$0xff]
        %v592 = vld [vmem:[#allocation8 + $0x3f8] sm:$0xff]
        %v593 = vld [vmem:[%s4] sm:$0x3]
        %v595 = vperm.slane %v593, 0
        %v596 = vperm.slane %v593, 1
        %599 = vmatpush.msra.mxu0 %v495
        %600 = vmatpush.msra.mxu0 %v493
        %601 = vmatpush.msra.mxu0 %v491
        %602 = vmatpush.msra.mxu0 %v489
        %603 = vmatpush.msra.mxu0 %v487
        %604 = vmatpush.msra.mxu0 %v485
        %605 = vmatpush.msra.mxu0 %v483
        %606 = vmatpush.msra.mxu0 %v481
        %607 = vmatpush.msra.mxu0 %v479
        %608 = vmatpush.msra.mxu0 %v477
        %609 = vmatpush.msra.mxu0 %v475
        %610 = vmatpush.msra.mxu0 %v473
        %611 = vmatpush.msra.mxu0 %v471
        %612 = vmatpush.msra.mxu0 %v469
        %613 = vmatpush.msra.mxu0 %v467
        %614 = vmatpush.msra.mxu0 %v465
        %615 = vmatmul.f32.gmra.mxu0 %v461
        %v616 = vpop.f32.mrf.mxu0
        %v617 = vadd.f32 %v595, %v616
        %618 = vdwg.mxu0
        %619 = vmatpush.msra.mxu0 %v527
        %620 = vmatpush.msra.mxu0 %v525
        %621 = vmatpush.msra.mxu0 %v523
        %622 = vmatpush.msra.mxu0 %v521
        %623 = vmatpush.msra.mxu0 %v519
        %624 = vmatpush.msra.mxu0 %v517
        %625 = vmatpush.msra.mxu0 %v515
        %626 = vmatpush.msra.mxu0 %v513
        %627 = vmatpush.msra.mxu0 %v511
        %628 = vmatpush.msra.mxu0 %v509
        %629 = vmatpush.msra.mxu0 %v507
        %630 = vmatpush.msra.mxu0 %v505
        %631 = vmatpush.msra.mxu0 %v503
        %632 = vmatpush.msra.mxu0 %v501
        %633 = vmatpush.msra.mxu0 %v499
        %634 = vmatpush.msra.mxu0 %v497
        %635 = vmatmul.f32.gmra.mxu0 %v462
        %v636 = vpop.f32.mrf.mxu0
        %v637 = vadd.f32 %v617, %v636
        %638 = vdwg.mxu0
        %639 = vmatpush.msra.mxu0 %v559
        %640 = vmatpush.msra.mxu0 %v557
        %641 = vmatpush.msra.mxu0 %v555
        %642 = vmatpush.msra.mxu0 %v553
        %643 = vmatpush.msra.mxu0 %v551
        %644 = vmatpush.msra.mxu0 %v549
        %645 = vmatpush.msra.mxu0 %v547
        %646 = vmatpush.msra.mxu0 %v545
        %647 = vmatpush.msra.mxu0 %v543
        %648 = vmatpush.msra.mxu0 %v541
        %649 = vmatpush.msra.mxu0 %v539
        %650 = vmatpush.msra.mxu0 %v537
        %651 = vmatpush.msra.mxu0 %v535
        %652 = vmatpush.msra.mxu0 %v533
        %653 = vmatpush.msra.mxu0 %v531
        %654 = vmatpush.msra.mxu0 %v529
        %655 = vmatmul.f32.gmra.mxu0 %v463
        %v656 = vpop.f32.mrf.mxu0
        %v657 = vadd.f32 %v637, %v656
        %658 = vdwg.mxu0
        %659 = vmatpush.msra.mxu0 %v591
        %660 = vmatpush.msra.mxu0 %v589
        %661 = vmatpush.msra.mxu0 %v587
        %662 = vmatpush.msra.mxu0 %v585
        %663 = vmatpush.msra.mxu0 %v583
        %664 = vmatpush.msra.mxu0 %v581
        %665 = vmatpush.msra.mxu0 %v579
        %666 = vmatpush.msra.mxu0 %v577
        %667 = vmatpush.msra.mxu0 %v575
        %668 = vmatpush.msra.mxu0 %v573
        %669 = vmatpush.msra.mxu0 %v571
        %670 = vmatpush.msra.mxu0 %v569
        %671 = vmatpush.msra.mxu0 %v567
        %672 = vmatpush.msra.mxu0 %v565
        %673 = vmatpush.msra.mxu0 %v563
        %674 = vmatpush.msra.mxu0 %v561
        %675 = vmatmul.f32.gmra.mxu0 %v464
        %v676 = vpop.f32.mrf.mxu0
        %v677 = vadd.f32 %v657, %v676
        %678 = vdwg.mxu0
        %679 = vmatpush.msra.mxu0 %v496
        %680 = vmatpush.msra.mxu0 %v494
        %681 = vmatpush.msra.mxu0 %v492
        %682 = vmatpush.msra.mxu0 %v490
        %683 = vmatpush.msra.mxu0 %v488
        %684 = vmatpush.msra.mxu0 %v486
        %685 = vmatpush.msra.mxu0 %v484
        %686 = vmatpush.msra.mxu0 %v482
        %687 = vmatpush.msra.mxu0 %v480
        %688 = vmatpush.msra.mxu0 %v478
        %689 = vmatpush.msra.mxu0 %v476
        %690 = vmatpush.msra.mxu0 %v474
        %691 = vmatpush.msra.mxu0 %v472
        %692 = vmatpush.msra.mxu0 %v470
        %693 = vmatpush.msra.mxu0 %v468
        %694 = vmatpush.msra.mxu0 %v466
        %695 = vmatmul.f32.gmra.mxu0 %v461
        %v696 = vpop.f32.mrf.mxu0
        %v697 = vadd.f32 %v596, %v696
        %698 = vdwg.mxu0
        %699 = vmatpush.msra.mxu0 %v528
        %700 = vmatpush.msra.mxu0 %v526
        %701 = vmatpush.msra.mxu0 %v524
        %702 = vmatpush.msra.mxu0 %v522
        %703 = vmatpush.msra.mxu0 %v520
        %704 = vmatpush.msra.mxu0 %v518
        %705 = vmatpush.msra.mxu0 %v516
        %706 = vmatpush.msra.mxu0 %v514
        %707 = vmatpush.msra.mxu0 %v512
        %708 = vmatpush.msra.mxu0 %v510
        %709 = vmatpush.msra.mxu0 %v508
        %710 = vmatpush.msra.mxu0 %v506
        %711 = vmatpush.msra.mxu0 %v504
        %712 = vmatpush.msra.mxu0 %v502
        %713 = vmatpush.msra.mxu0 %v500
        %714 = vmatpush.msra.mxu0 %v498
        %715 = vmatmul.f32.gmra.mxu0 %v462
        %v716 = vpop.f32.mrf.mxu0
        %v717 = vadd.f32 %v697, %v716
        %718 = vdwg.mxu0
        %719 = vmatpush.msra.mxu0 %v560
        %720 = vmatpush.msra.mxu0 %v558
        %721 = vmatpush.msra.mxu0 %v556
        %722 = vmatpush.msra.mxu0 %v554
        %723 = vmatpush.msra.mxu0 %v552
        %724 = vmatpush.msra.mxu0 %v550
        %725 = vmatpush.msra.mxu0 %v548
        %726 = vmatpush.msra.mxu0 %v546
        %727 = vmatpush.msra.mxu0 %v544
        %728 = vmatpush.msra.mxu0 %v542
        %729 = vmatpush.msra.mxu0 %v540
        %730 = vmatpush.msra.mxu0 %v538
        %731 = vmatpush.msra.mxu0 %v536
        %732 = vmatpush.msra.mxu0 %v534
        %733 = vmatpush.msra.mxu0 %v532
        %734 = vmatpush.msra.mxu0 %v530
        %735 = vmatmul.f32.gmra.mxu0 %v463
        %v736 = vpop.f32.mrf.mxu0
        %v737 = vadd.f32 %v717, %v736
        %738 = vdwg.mxu0
        %739 = vmatpush.msra.mxu0 %v592
        %740 = vmatpush.msra.mxu0 %v590
        %741 = vmatpush.msra.mxu0 %v588
        %742 = vmatpush.msra.mxu0 %v586
        %743 = vmatpush.msra.mxu0 %v584
        %744 = vmatpush.msra.mxu0 %v582
        %745 = vmatpush.msra.mxu0 %v580
        %746 = vmatpush.msra.mxu0 %v578
        %747 = vmatpush.msra.mxu0 %v576
        %748 = vmatpush.msra.mxu0 %v574
        %749 = vmatpush.msra.mxu0 %v572
        %750 = vmatpush.msra.mxu0 %v570
        %751 = vmatpush.msra.mxu0 %v568
        %752 = vmatpush.msra.mxu0 %v566
        %753 = vmatpush.msra.mxu0 %v564
        %754 = vmatpush.msra.mxu0 %v562
        %755 = vmatmul.f32.gmra.mxu0 %v464
        %v756 = vpop.f32.mrf.mxu0
        %v757 = vadd.f32 %v737, %v756
        %758 = vdwg.mxu0
        %v759 = vmul.f32 %v677, 0.1
        %v760 = vmul.f32 %v757, 0.1
        %v761 = vsub.f32 %v759, 0.9
        %v762 = vsub.f32 %v760, 0.9
        %v763 = vadd.f32 %v759, 0.9
        %v764 = vadd.f32 %v760, 0.9
        %v765 = vmin.f32 %v763, %v677
        %v766 = vmin.f32 %v764, %v757
        %v767 = vmax.f32 %v761, %v765
        %v768 = vmax.f32 %v762, %v766
        %769 = vst [vmem:[%s289] sm:$0xff] %v767
        %770 = vst [vmem:[%s289 + $0x8] sm:$0xff] %v768
        %s771 = sand.u32 %s142, 1
        %s772 = scalar_lea.sflag [#allocation4], %s771
        %s773 = sand.u32 %s142, 1
        %s774 = smul.addr %s773, 16
        %s775 = scalar_lea.vmem [#allocation10], %s774
        // Predicated region
        $region57: #{tpu_custom_call.1} parent=39 // pred_check
          %p776 = pneg %p152
        $region58: #{tpu_custom_call.1} parent=39 // pred_check_branch
          %778 = sbr.rel (%p776) target = $region60
        $region59: #{tpu_custom_call.1} parent=39 // pred_region
          %780 = vsyncadd %s772, 0
          %s781 = smul.addr %s24, 2
          %s782 = smul.addr %s781, 8
          %s783 = scalar_lea.hbm %s5, %s782
          %s785 = sshll.u32 %s775, 4
          %s786 = int_to_ptr.vmem [resolvable:$true] %s785
          %s787 = sshll.u32 %s783, 4
          %s788 = int_to_ptr.hbm [resolvable:$true] %s787
          %790 = dma.vmem_to_hbm [thread:$0]  %s786, 256, %s788, %s772
        $region60: #{tpu_custom_call.1} parent=39 // pred_fallthru
          _
      $region40: #{tpu_custom_call.1} parent=5 // pred_fallthru
        _
      %p791 = scmp.le.s32.totalorder 2, %s19
      // Predicated region
      $region61: #{tpu_custom_call.1} parent=5 // pred_check
        %p792 = pneg %p791
      $region62: #{tpu_custom_call.1} parent=5 // pred_check_branch
        %794 = sbr.rel (%p792) target = $region64
      $region63: #{tpu_custom_call.1} parent=5 // pred_region
        %s795 = ssub.s32 %s19, 2
        // Predicated region
        $region65: #{tpu_custom_call.1} parent=63 // pred_check
          %p796 = pneg %p158
        $region66: #{tpu_custom_call.1} parent=63 // pred_check_branch
          %798 = sbr.rel (%p796) target = $region68
        $region67: #{tpu_custom_call.1} parent=63 // pred_region
          %s799 = sand.u32 %s143, 1
          %s800 = scalar_lea.sflag [#allocation4], %s799
          %s801 = sand.u32 %s143, 1
          %s802 = smul.addr %s801, 16
          %s803 = scalar_lea.vmem [#allocation10], %s802
          %805 = dma.done %s800, 256
        $region68: #{tpu_custom_call.1} parent=63 // pred_fallthru
          _
      $region64: #{tpu_custom_call.1} parent=5 // pred_fallthru
        _
    $region6: #{tpu_custom_call.1} parent=1 // loop_footer
      %s23 = sadd.s32 1, %s19
    $region7: #{tpu_custom_call.1} parent=1 // loop_footer_branch
      %18 = sbr.rel target = $region3
    $region8: #{tpu_custom_call.1} parent=1 // loop_exit
      _
    %806 = vsyncpa [#allocation3], 1
    %s807 = scalar_lea.sflag [#allocation3], 1
    %808 = vsyncpa %s807, 1
    %809 = vsyncpa [#allocation6], 1
    %810 = vsyncpa [#allocation9], 1
    %811 = vsyncpa [#allocation4], 1
    %s812 = scalar_lea.sflag [#allocation4], 1
    %813 = vsyncpa %s812, 1

</llo_original>
